<compile_context>
chip_gen: v5e
topology: v5e:2x2
jax: 0.10.0
libtpu: 0.0.40
codegen_flags: <defaults>
</compile_context>

<pallas_src>
import jax
import jax.numpy as jnp
from jax.experimental import pallas as pl
from jax.experimental.pallas import tpu as pltpu

HIDDEN = 256
BN_EPS = 1e-5
LEAKY_SLOPE = 0.2


def _round_up(n, m):
    return (n + m - 1) // m * m


def _vmem_budget_bytes():
    """Generation-aware usable-VMEM budget: 3/4 of physical, 48 MiB fallback."""
    try:
        cap = int(pltpu.get_tpu_info().vmem_capacity_bytes)
    except Exception:
        cap = 64 * 1024 * 1024          # conservative: v7x per-core VMEM
    return (cap * 3) // 4


def _make_kernel(batch, tile_b, h_resident):
    """Build the two-phase kernel closed over static sizes."""
    inv_b = 1.0 / float(batch)

    def kernel(x_ref, w1_ref, gamma_ref, beta_ref, w2_ref, b2_ref,
               o_ref, sum_ref, sumsq_ref, scale_ref, shift_ref, *h_scratch):
        phase = pl.program_id(0)
        i = pl.program_id(1)

        # ---------------- phase 0: fc1 + batch statistics ----------------
        @pl.when(phase == 0)
        def _fc1_and_stats():
            @pl.when(i == 0)
            def _init():
                sum_ref[...] = jnp.zeros_like(sum_ref)
                sumsq_ref[...] = jnp.zeros_like(sumsq_ref)

            # fc1 WITHOUT bias: BatchNorm's mean subtraction cancels any
            # per-feature additive bias exactly.  Zero-padded batch rows
            # therefore produce exactly-zero h and need no masking.
            h = jnp.dot(x_ref[...], w1_ref[...],
                        preferred_element_type=jnp.float32)
            sum_ref[...] += jnp.sum(h, axis=0, keepdims=True)
            sumsq_ref[...] += jnp.sum(h * h, axis=0, keepdims=True)
            if h_resident:
                row0 = pl.multiple_of(i * tile_b, tile_b)
                h_scratch[0][pl.ds(row0, tile_b), :] = h

        # ------------- phase 1: BN fold + LeakyReLU + fc2 -----------------
        @pl.when(phase == 1)
        def _normalize_and_project():
            @pl.when(i == 0)
            def _finalize_stats():
                mean = sum_ref[...] * inv_b
                var = jnp.maximum(sumsq_ref[...] * inv_b - mean * mean, 0.0)
                inv_std = jax.lax.rsqrt(var + BN_EPS)
                scale = gamma_ref[...] * inv_std
                scale_ref[...] = scale
                shift_ref[...] = beta_ref[...] - mean * scale

            if h_resident:
                row0 = pl.multiple_of(i * tile_b, tile_b)
                h = h_scratch[0][pl.ds(row0, tile_b), :]
            else:
                h = jnp.dot(x_ref[...], w1_ref[...],
                            preferred_element_type=jnp.float32)

            # BN folded into a single per-feature scale/shift.
            hn = h * scale_ref[...] + shift_ref[...]
            # LeakyReLU(0.2) as a single max (slope < 1).
            a = jnp.maximum(hn, LEAKY_SLOPE * hn)
            # fc2 as w2 @ a^T: (1,256) x (tile_b,256)^T -> (1, tile_b).
            # The result is already lane-dense along the batch axis, so the
            # output store is full-width vst's + a dense writeback DMA.
            out_row = jax.lax.dot_general(
                w2_ref[...], a,
                dimension_numbers=(((1,), (1,)), ((), ())),
                preferred_element_type=jnp.float32)
            o_ref[...] = (out_row + b2_ref[0]).astype(o_ref.dtype)

    return kernel


def discriminator_forward(x, w1_t, b1, gamma, beta, w2_row, b2, *,
                          block_b=None, force_recompute=False):
    """x:[B,F] f32; w1_t:[F,256] (fc1.weight.T); b1:[256] (unused: cancelled by BN);
    gamma/beta:[256]; w2_row:[1,256]; b2:[1].  Returns [B,1] f32."""
    del b1  # BatchNorm's mean subtraction cancels the fc1 bias exactly.
    B, F = x.shape

    # ---- batch tiling: large tiles (~0.5-2 MiB of x per tile) -------------
    if block_b is None:
        block_b = max(1024, min(8192, (2 * 1024 * 1024) // (2 * F)))
    if B <= block_b:
        tile_b = _round_up(B, 16)                   # bf16 packs 2 rows/sublane
        nb = 1
    else:
        nb = pl.cdiv(B, block_b)
        tile_b = _round_up(pl.cdiv(B, nb), 128)     # lane/sublane friendly
    b_pad = nb * tile_b

    # ---- generation-aware VMEM budgeting -----------------------------------
    budget = _vmem_budget_bytes()
    tile_bytes = (2 * tile_b * F * 2        # x tiles (bf16, double-buffered)
                  + 2 * F * HIDDEN * 2      # fc1 weights (bf16)
                  + 6 * HIDDEN * 4          # gamma / beta / w2
                  + 2 * tile_b * 4          # output row tiles
                  + 4 * HIDDEN * 4)         # stats scratch
    h_bytes = b_pad * HIDDEN * 4            # resident fc1 activations (f32)
    h_resident = (not force_recompute) and (tile_bytes + h_bytes <= budget)

    # ---- operands (bf16 MXU fast path; BN math stays f32) ------------------
    x_bf = x.astype(jnp.bfloat16)
    if b_pad != B:
        x_bf = jnp.pad(x_bf, ((0, b_pad - B), (0, 0)))
    w1_bf = w1_t.astype(jnp.bfloat16)
    gamma = gamma.reshape(1, HIDDEN).astype(jnp.float32)
    beta = beta.reshape(1, HIDDEN).astype(jnp.float32)
    w2_row = w2_row.reshape(1, HIDDEN).astype(jnp.float32)
    b2 = b2.reshape(1).astype(jnp.float32)

    kernel = _make_kernel(B, tile_b, h_resident)

    # With h resident in VMEM, phase 1 does not stream x again.
    if h_resident:
        x_map = lambda ph, i: (i * (1 - ph), 0)
    else:
        x_map = lambda ph, i: (i, 0)

    scratch = [pltpu.VMEM((1, HIDDEN), jnp.float32)] * 4   # sum/sumsq/scale/shift
    if h_resident:
        scratch = scratch + [pltpu.VMEM((b_pad, HIDDEN), jnp.float32)]

    grid_spec = pltpu.PrefetchScalarGridSpec(
        num_scalar_prefetch=0,
        grid=(2, nb),                                       # (phase, batch_tile)
        in_specs=[
            pl.BlockSpec((tile_b, F), x_map),                     # x tile (bf16)
            pl.BlockSpec((F, HIDDEN), lambda ph, i: (0, 0)),      # fc1 W.T (resident)
            pl.BlockSpec((1, HIDDEN), lambda ph, i: (0, 0)),      # bn gamma
            pl.BlockSpec((1, HIDDEN), lambda ph, i: (0, 0)),      # bn beta
            pl.BlockSpec((1, HIDDEN), lambda ph, i: (0, 0)),      # fc2 weight row
            pl.BlockSpec(memory_space=pltpu.MemorySpace.SMEM),    # fc2 bias scalar
        ],
        # Lane-dense (1, tile_b) output blocks of a (1, b_pad) result row.
        # Phase 0 pins the output to block 0 -> no uninitialized writebacks.
        out_specs=pl.BlockSpec((1, tile_b), lambda ph, i: (0, ph * i)),
        scratch_shapes=scratch,
    )

    mm_flops = 2 * b_pad * F * HIDDEN
    flops = mm_flops * (1 if h_resident else 2) + 8 * b_pad * HIDDEN
    bytes_accessed = (b_pad * F * 2 * (1 if h_resident else 2)
                      + F * HIDDEN * 2 + 4 * HIDDEN * 4 + b_pad * 4)

    out = pl.pallas_call(
        kernel,
        out_shape=jax.ShapeDtypeStruct((1, b_pad), jnp.float32),
        grid_spec=grid_spec,
        compiler_params=pltpu.CompilerParams(
            # phase axis and stats-accumulation axis must stay sequential.
            dimension_semantics=("arbitrary", "arbitrary"),
            vmem_limit_bytes=int(budget)),
        cost_estimate=pl.CostEstimate(flops=flops,
                                      transcendentals=HIDDEN,
                                      bytes_accessed=bytes_accessed),
    )(x_bf, w1_bf, gamma, beta, w2_row, b2)

    return out[0, :B].reshape(B, 1)


def _reference_forward(x, w1_t, b1, gamma, beta, w2_row, b2):
    """Pure-JAX f32 reference of the PyTorch module (training-mode BN)."""
    hi = jax.lax.Precision.HIGHEST
    h = jnp.dot(x, w1_t, precision=hi) + b1.reshape(1, HIDDEN)
    mean = jnp.mean(h, axis=0, keepdims=True)
    var = jnp.mean((h - mean) ** 2, axis=0, keepdims=True)
    hn = (h - mean) / jnp.sqrt(var + BN_EPS) * gamma.reshape(1, HIDDEN) \
        + beta.reshape(1, HIDDEN)
    a = jnp.where(hn >= 0, hn, LEAKY_SLOPE * hn)
    return jnp.dot(a, w2_row.reshape(1, HIDDEN).T, precision=hi) + b2.reshape(1)


def _run_case(key, batch, feature_size, block_b=None, force_recompute=False):
    k_x, k_w1, k_b1, k_g, k_be, k_w2, k_b2 = jax.random.split(key, 7)
    x = jax.random.normal(k_x, (batch, feature_size), dtype=jnp.float32)

    lim1 = 1.0 / float(feature_size) ** 0.5
    w1_t = jax.random.uniform(k_w1, (feature_size, HIDDEN), jnp.float32,
                              -lim1, lim1)                      # fc1.weight.T
    b1 = jax.random.uniform(k_b1, (HIDDEN,), jnp.float32, -lim1, lim1)
    gamma = 1.0 + 0.1 * jax.random.normal(k_g, (HIDDEN,), jnp.float32)
    beta = 0.1 * jax.random.normal(k_be, (HIDDEN,), jnp.float32)
    lim2 = 1.0 / float(HIDDEN) ** 0.5
    w2_row = jax.random.uniform(k_w2, (1, HIDDEN), jnp.float32, -lim2, lim2)
    b2 = jax.random.uniform(k_b2, (1,), jnp.float32, -lim2, lim2)

    out = discriminator_forward(x, w1_t, b1, gamma, beta, w2_row, b2,
                                block_b=block_b,
                                force_recompute=force_recompute)
    out = jax.block_until_ready(out)
    assert out.shape == (batch, 1)

    # Tight check: same math, inputs rounded to bf16 exactly as the kernel sees them.
    x_r = x.astype(jnp.bfloat16).astype(jnp.float32)
    w1_r = w1_t.astype(jnp.bfloat16).astype(jnp.float32)
    ref_matched = _reference_forward(x_r, w1_r, b1, gamma, beta, w2_row, b2)
    assert jnp.allclose(out, ref_matched, atol=2e-3, rtol=2e-3), \
        "mismatch vs bf16-matched reference"

    # Loose sanity check vs the pure-f32 module (bounds the bf16 fast-path error).
    ref_f32 = _reference_forward(x, w1_t, b1, gamma, beta, w2_row, b2)
    assert jnp.allclose(out, ref_f32, atol=1e-1, rtol=1e-1), \
        "mismatch vs f32 reference"


if __name__ == "__main__":
    key = jax.random.PRNGKey(0)
    k1, k2, k3 = jax.random.split(key, 3)

    # Single-tile case (B fits one tile, no padding), h-resident fast path.
    _run_case(k1, batch=64, feature_size=32)
    # Multi-tile case with padded batch rows (grid + lane-dense tiled output).
    _run_case(k2, batch=200, feature_size=32, block_b=128)
    # Recompute fallback path (h not kept resident; x streamed in both phases).
    _run_case(k3, batch=200, feature_size=32, block_b=128, force_recompute=True)

    print("KERNEL_OK")
</pallas_src>

<mosaic_0001>
module attributes {stable_mosaic.version = 11 : i64} {
  func.func @kernel(%arg0: i32, %arg1: i32, %arg2: memref<64x32xbf16, #tpu.memory_space<vmem>>, %arg3: memref<32x256xbf16, #tpu.memory_space<vmem>>, %arg4: memref<1x256xf32, #tpu.memory_space<vmem>>, %arg5: memref<1x256xf32, #tpu.memory_space<vmem>>, %arg6: memref<1x256xf32, #tpu.memory_space<vmem>>, %arg7: memref<1xf32, #tpu.memory_space<smem>>, %arg8: memref<1x64xf32, #tpu.memory_space<vmem>>, %arg9: memref<1x256xf32, #tpu.memory_space<vmem>>, %arg10: memref<1x256xf32, #tpu.memory_space<vmem>>, %arg11: memref<1x256xf32, #tpu.memory_space<vmem>>, %arg12: memref<1x256xf32, #tpu.memory_space<vmem>>, %arg13: memref<64x256xf32, #tpu.memory_space<vmem>>) attributes {dimension_semantics = [#tpu.dimension_semantics<arbitrary>, #tpu.dimension_semantics<arbitrary>], iteration_bounds = array<i64: 2, 1>, scalar_prefetch = 0 : i64, scratch_operands = 5 : i64, tpu.core_type = #tpu.core_type<tc>, window_params = [{transform_indices = @transform_0, window_bounds = array<i64: 64, 32>}, {pipeline_mode = #tpu.pipeline_mode<synchronous>, transform_indices = @transform_1, window_bounds = array<i64: 32, 256>}, {pipeline_mode = #tpu.pipeline_mode<synchronous>, transform_indices = @transform_2, window_bounds = array<i64: 1, 256>}, {pipeline_mode = #tpu.pipeline_mode<synchronous>, transform_indices = @transform_3, window_bounds = array<i64: 1, 256>}, {pipeline_mode = #tpu.pipeline_mode<synchronous>, transform_indices = @transform_4, window_bounds = array<i64: 1, 256>}, {transform_indices = @transform_5, window_bounds = array<i64: 1>}, {transform_indices = @transform_6, window_bounds = array<i64: 1, 64>}]} {
    %c0_i32 = arith.constant 0 : i32
    %0 = arith.cmpi eq, %arg0, %c0_i32 : i32
    %1 = arith.extui %0 : i1 to i32
    %c0_i32_0 = arith.constant 0 : i32
    %2 = arith.cmpi ne, %1, %c0_i32_0 : i32
    scf.if %2 {
      %c0_i32_2 = arith.constant 0 : i32
      %6 = arith.cmpi eq, %arg1, %c0_i32_2 : i32
      %7 = arith.extui %6 : i1 to i32
      %c0_i32_3 = arith.constant 0 : i32
      %8 = arith.cmpi ne, %7, %c0_i32_3 : i32
      scf.if %8 {
        %cst_18 = arith.constant 0.000000e+00 : f32
        %27 = vector.broadcast %cst_18 : f32 to vector<1x256xf32>
        %c0_19 = arith.constant 0 : index
        %c0_20 = arith.constant 0 : index
        %28 = vector.load %arg9[%c0_19, %c0_20] : memref<1x256xf32, #tpu.memory_space<vmem>>, vector<1x256xf32>
        tpu.vector_store %arg9[%c0_19, %c0_20], %27 {strides = array<i32>} : memref<1x256xf32, #tpu.memory_space<vmem>>, vector<1x256xf32>,
        %cst_21 = arith.constant 0.000000e+00 : f32
        %29 = vector.broadcast %cst_21 : f32 to vector<1x256xf32>
        %c0_22 = arith.constant 0 : index
        %c0_23 = arith.constant 0 : index
        %30 = vector.load %arg10[%c0_22, %c0_23] : memref<1x256xf32, #tpu.memory_space<vmem>>, vector<1x256xf32>
        tpu.vector_store %arg10[%c0_22, %c0_23], %29 {strides = array<i32>} : memref<1x256xf32, #tpu.memory_space<vmem>>, vector<1x256xf32>,
      } else {
      }
      %c0 = arith.constant 0 : index
      %c0_4 = arith.constant 0 : index
      %9 = vector.load %arg2[%c0, %c0_4] : memref<64x32xbf16, #tpu.memory_space<vmem>>, vector<64x32xbf16>
      %c0_5 = arith.constant 0 : index
      %c0_6 = arith.constant 0 : index
      %10 = vector.load %arg3[%c0_5, %c0_6] : memref<32x256xbf16, #tpu.memory_space<vmem>>, vector<32x256xbf16>
      %cst = arith.constant dense<0.000000e+00> : vector<64x256xf32>
      %11 = tpu.matmul %9, %10, %cst {dimension_numbers = #tpu.dot_dimension_numbers<[1], [0], [0], [1], [0, 0, 1, 1], [], []>} : vector<64x32xbf16>, vector<32x256xbf16>, vector<64x256xf32> -> vector<64x256xf32>
      %c0_7 = arith.constant 0 : index
      %c0_8 = arith.constant 0 : index
      %12 = vector.load %arg9[%c0_7, %c0_8] : memref<1x256xf32, #tpu.memory_space<vmem>>, vector<1x256xf32>
      %cst_9 = arith.constant dense<0.000000e+00> : vector<256xf32>
      %13 = vector.multi_reduction <add>, %11, %cst_9 [0] : vector<64x256xf32> to vector<256xf32>
      %14 = vector.shape_cast %13 : vector<256xf32> to vector<1x256xf32>
      %15 = arith.addf %12, %14 : vector<1x256xf32>
      %c0_10 = arith.constant 0 : index
      %c0_11 = arith.constant 0 : index
      %16 = vector.load %arg9[%c0_10, %c0_11] : memref<1x256xf32, #tpu.memory_space<vmem>>, vector<1x256xf32>
      tpu.vector_store %arg9[%c0_10, %c0_11], %15 {strides = array<i32>} : memref<1x256xf32, #tpu.memory_space<vmem>>, vector<1x256xf32>,
      %c0_12 = arith.constant 0 : index
      %c0_13 = arith.constant 0 : index
      %17 = vector.load %arg10[%c0_12, %c0_13] : memref<1x256xf32, #tpu.memory_space<vmem>>, vector<1x256xf32>
      %18 = arith.mulf %11, %11 : vector<64x256xf32>
      %cst_14 = arith.constant dense<0.000000e+00> : vector<256xf32>
      %19 = vector.multi_reduction <add>, %18, %cst_14 [0] : vector<64x256xf32> to vector<256xf32>
      %20 = vector.shape_cast %19 : vector<256xf32> to vector<1x256xf32>
      %21 = arith.addf %17, %20 : vector<1x256xf32>
      %c0_15 = arith.constant 0 : index
      %c0_16 = arith.constant 0 : index
      %22 = vector.load %arg10[%c0_15, %c0_16] : memref<1x256xf32, #tpu.memory_space<vmem>>, vector<1x256xf32>
      tpu.vector_store %arg10[%c0_15, %c0_16], %21 {strides = array<i32>} : memref<1x256xf32, #tpu.memory_space<vmem>>, vector<1x256xf32>,
      %c64_i32 = arith.constant 64 : i32
      %23 = arith.muli %arg1, %c64_i32 : i32
      %24 = tpu.assume_multiple %23, 64 : i32
      %25 = arith.index_cast %24 : i32 to index
      %c0_17 = arith.constant 0 : index
      %26 = vector.load %arg13[%25, %c0_17] : memref<64x256xf32, #tpu.memory_space<vmem>>, vector<64x256xf32>
      tpu.vector_store %arg13[%25, %c0_17], %11 {strides = array<i32>} : memref<64x256xf32, #tpu.memory_space<vmem>>, vector<64x256xf32>,
    } else {
    }
    %c1_i32 = arith.constant 1 : i32
    %3 = arith.cmpi eq, %arg0, %c1_i32 : i32
    %4 = arith.extui %3 : i1 to i32
    %c0_i32_1 = arith.constant 0 : i32
    %5 = arith.cmpi ne, %4, %c0_i32_1 : i32
    scf.if %5 {
      %c0_i32_2 = arith.constant 0 : i32
      %6 = arith.cmpi eq, %arg1, %c0_i32_2 : i32
      %7 = arith.extui %6 : i1 to i32
      %c0_i32_3 = arith.constant 0 : i32
      %8 = arith.cmpi ne, %7, %c0_i32_3 : i32
      scf.if %8 {
        %c0_14 = arith.constant 0 : index
        %c0_15 = arith.constant 0 : index
        %28 = vector.load %arg9[%c0_14, %c0_15] : memref<1x256xf32, #tpu.memory_space<vmem>>, vector<1x256xf32>
        %cst_16 = arith.constant 1.562500e-02 : f32
        %29 = vector.broadcast %cst_16 : f32 to vector<1x256xf32>
        %30 = arith.mulf %28, %29 : vector<1x256xf32>
        %c0_17 = arith.constant 0 : index
        %c0_18 = arith.constant 0 : index
        %31 = vector.load %arg10[%c0_17, %c0_18] : memref<1x256xf32, #tpu.memory_space<vmem>>, vector<1x256xf32>
        %cst_19 = arith.constant 1.562500e-02 : f32
        %32 = vector.broadcast %cst_19 : f32 to vector<1x256xf32>
        %33 = arith.mulf %31, %32 : vector<1x256xf32>
        %34 = arith.mulf %30, %30 : vector<1x256xf32>
        %35 = arith.subf %33, %34 : vector<1x256xf32>
        %cst_20 = arith.constant 0.000000e+00 : f32
        %36 = vector.broadcast %cst_20 : f32 to vector<1x256xf32>
        %37 = arith.maximumf %35, %36 : vector<1x256xf32>
        %cst_21 = arith.constant 9.99999974E-6 : f32
        %38 = vector.broadcast %cst_21 : f32 to vector<1x256xf32>
        %39 = arith.addf %37, %38 : vector<1x256xf32>
        %40 = math.rsqrt %39 : vector<1x256xf32>
        %c0_22 = arith.constant 0 : index
        %c0_23 = arith.constant 0 : index
        %41 = vector.load %arg4[%c0_22, %c0_23] : memref<1x256xf32, #tpu.memory_space<vmem>>, vector<1x256xf32>
        %42 = arith.mulf %41, %40 : vector<1x256xf32>
        %c0_24 = arith.constant 0 : index
        %c0_25 = arith.constant 0 : index
        %43 = vector.load %arg11[%c0_24, %c0_25] : memref<1x256xf32, #tpu.memory_space<vmem>>, vector<1x256xf32>
        tpu.vector_store %arg11[%c0_24, %c0_25], %42 {strides = array<i32>} : memref<1x256xf32, #tpu.memory_space<vmem>>, vector<1x256xf32>,
        %c0_26 = arith.constant 0 : index
        %c0_27 = arith.constant 0 : index
        %44 = vector.load %arg5[%c0_26, %c0_27] : memref<1x256xf32, #tpu.memory_space<vmem>>, vector<1x256xf32>
        %45 = arith.mulf %30, %42 : vector<1x256xf32>
        %46 = arith.subf %44, %45 : vector<1x256xf32>
        %c0_28 = arith.constant 0 : index
        %c0_29 = arith.constant 0 : index
        %47 = vector.load %arg12[%c0_28, %c0_29] : memref<1x256xf32, #tpu.memory_space<vmem>>, vector<1x256xf32>
        tpu.vector_store %arg12[%c0_28, %c0_29], %46 {strides = array<i32>} : memref<1x256xf32, #tpu.memory_space<vmem>>, vector<1x256xf32>,
      } else {
      }
      %c64_i32 = arith.constant 64 : i32
      %9 = arith.muli %arg1, %c64_i32 : i32
      %10 = tpu.assume_multiple %9, 64 : i32
      %11 = arith.index_cast %10 : i32 to index
      %c0 = arith.constant 0 : index
      %12 = vector.load %arg13[%11, %c0] : memref<64x256xf32, #tpu.memory_space<vmem>>, vector<64x256xf32>
      %c0_4 = arith.constant 0 : index
      %c0_5 = arith.constant 0 : index
      %13 = vector.load %arg11[%c0_4, %c0_5] : memref<1x256xf32, #tpu.memory_space<vmem>>, vector<1x256xf32>
      %14 = vector.broadcast %13 : vector<1x256xf32> to vector<64x256xf32>
      %15 = arith.mulf %12, %14 : vector<64x256xf32>
      %c0_6 = arith.constant 0 : index
      %c0_7 = arith.constant 0 : index
      %16 = vector.load %arg12[%c0_6, %c0_7] : memref<1x256xf32, #tpu.memory_space<vmem>>, vector<1x256xf32>
      %17 = vector.broadcast %16 : vector<1x256xf32> to vector<64x256xf32>
      %18 = arith.addf %15, %17 : vector<64x256xf32>
      %cst = arith.constant 2.000000e-01 : f32
      %19 = vector.broadcast %cst : f32 to vector<64x256xf32>
      %20 = arith.mulf %19, %18 : vector<64x256xf32>
      %21 = arith.maximumf %18, %20 : vector<64x256xf32>
      %c0_8 = arith.constant 0 : index
      %c0_9 = arith.constant 0 : index
      %22 = vector.load %arg6[%c0_8, %c0_9] : memref<1x256xf32, #tpu.memory_space<vmem>>, vector<1x256xf32>
      %cst_10 = arith.constant dense<0.000000e+00> : vector<1x64xf32>
      %23 = tpu.matmul %22, %21, %cst_10 {dimension_numbers = #tpu.dot_dimension_numbers<[1], [1], [0], [0], [0, 0, 1, 0], [], []>} : vector<1x256xf32>, vector<64x256xf32>, vector<1x64xf32> -> vector<1x64xf32>
      %c0_11 = arith.constant 0 : index
      %24 = memref.load %arg7[%c0_11] : memref<1xf32, #tpu.memory_space<smem>>
      %25 = vector.broadcast %24 : f32 to vector<1x64xf32>
      %26 = arith.addf %23, %25 : vector<1x64xf32>
      %c0_12 = arith.constant 0 : index
      %c0_13 = arith.constant 0 : index
      %27 = vector.load %arg8[%c0_12, %c0_13] : memref<1x64xf32, #tpu.memory_space<vmem>>, vector<1x64xf32>
      tpu.vector_store %arg8[%c0_12, %c0_13], %26 {strides = array<i32>} : memref<1x64xf32, #tpu.memory_space<vmem>>, vector<1x64xf32>,
    } else {
    }
    return
  }
  func.func @transform_0(%arg0: i32, %arg1: i32) -> (i32, i32) {
    %c1_i32 = arith.constant 1 : i32
    %0 = arith.subi %c1_i32, %arg0 : i32
    %1 = arith.muli %arg1, %0 : i32
    %c0_i32 = arith.constant 0 : i32
    %c0_i32_0 = arith.constant 0 : i32
    return %1, %c0_i32 : i32, i32
  }
  func.func @transform_1(%arg0: i32, %arg1: i32) -> (i32, i32) {
    %c0_i32 = arith.constant 0 : i32
    %c0_i32_0 = arith.constant 0 : i32
    %c0_i32_1 = arith.constant 0 : i32
    return %c0_i32, %c0_i32_0 : i32, i32
  }
  func.func @transform_2(%arg0: i32, %arg1: i32) -> (i32, i32) {
    %c0_i32 = arith.constant 0 : i32
    %c0_i32_0 = arith.constant 0 : i32
    %c0_i32_1 = arith.constant 0 : i32
    return %c0_i32, %c0_i32_0 : i32, i32
  }
  func.func @transform_3(%arg0: i32, %arg1: i32) -> (i32, i32) {
    %c0_i32 = arith.constant 0 : i32
    %c0_i32_0 = arith.constant 0 : i32
    %c0_i32_1 = arith.constant 0 : i32
    return %c0_i32, %c0_i32_0 : i32, i32
  }
  func.func @transform_4(%arg0: i32, %arg1: i32) -> (i32, i32) {
    %c0_i32 = arith.constant 0 : i32
    %c0_i32_0 = arith.constant 0 : i32
    %c0_i32_1 = arith.constant 0 : i32
    return %c0_i32, %c0_i32_0 : i32, i32
  }
  func.func @transform_5(%arg0: i32, %arg1: i32) -> i32 {
    %c0_i32 = arith.constant 0 : i32
    %c0_i32_0 = arith.constant 0 : i32
    return %c0_i32 : i32
  }
  func.func @transform_6(%arg0: i32, %arg1: i32) -> (i32, i32) {
    %0 = arith.muli %arg0, %arg1 : i32
    %c0_i32 = arith.constant 0 : i32
    %c0_i32_0 = arith.constant 0 : i32
    return %c0_i32, %0 : i32, i32
  }
}

</mosaic_0001>

<llo_original>
// kernel: tpu_custom_call.1
$region0: #{tpu_custom_call.1}
  #allocation0 [shape = 'u32[]', space=smem, size = 0x4, offset = 0x4, fixed_abs, tag = 'smem constant byte address 0x4 - core index']
  #allocation1 [shape = 'u32[72,128]{1,0:T(1,128)}', space=vmem, size = 0x9000, scoped, tag = 'internal scratch']
  #allocation2 [shape = 'f32[1,256]{1,0:T(1,128)}', space=vmem, size = 0x400, scoped, tag = 'scratch operand']
  #allocation3 [shape = 'f32[1,256]{1,0:T(1,128)}', space=vmem, size = 0x400, scoped, tag = 'scratch operand']
  #allocation4 [shape = 'f32[1,256]{1,0:T(1,128)}', space=vmem, size = 0x400, scoped, tag = 'scratch operand']
  #allocation5 [shape = 'f32[1,256]{1,0:T(1,128)}', space=vmem, size = 0x400, scoped, tag = 'scratch operand']
  #allocation6 [shape = 'f32[64,256]{1,0:T(8,128)}', space=vmem, size = 0x10000, scoped, tag = 'scratch operand']
  #allocation7 [shape = 'f32[1]{0:T(128)S(6)}', space=smem, size = 0x200, scoped, tag = 'scoped memory for tpu_custom_call.1']
  %s0 = inlined_call_operand.vmem [shape: bf16[64,32], index: 0, kind: input, shape index: {}]
  %s1 = inlined_call_operand.vmem [shape: bf16[32,256], index: 1, kind: input, shape index: {}]
  %s2 = inlined_call_operand.vmem [shape: f32[1,256], index: 2, kind: input, shape index: {}]
  %s3 = inlined_call_operand.vmem [shape: f32[1,256], index: 3, kind: input, shape index: {}]
  %s4 = inlined_call_operand.vmem [shape: f32[1,256], index: 4, kind: input, shape index: {}]
  %s5 = inlined_call_operand.<no memory space> [shape: f32[1], index: 5, kind: input, shape index: {}]
  %s6 = inlined_call_operand.hbm [shape: f32[1,64], index: 6, kind: output, shape index: {}]
  %s7 = sld [smem:[#allocation0]]
  $region73: #{tpu_custom_call.1} parent=0
    _
  %s9 = ssub.s32 1, %s7
  %s10 = scalar_select 0, %s9, %s7
  %11 = sst [smem:[#allocation7]] %s5
  $region1: #{tpu_custom_call.1} parent=0
    #allocation8 [shape = 'u8[1024]{0}', space=vmem, size = 0x400, scoped, tag = 'output window, operand 0']
    #allocation9 [shape = 's32[2]{0}', space=sflag, size = 0x8, scoped, tag = 'scoped memory for tpu_custom_call.1']
    %12 = vsyncpa [#allocation9], 0
    %s13 = scalar_lea.sflag [#allocation9], 1
    %14 = vsyncpa %s13, 0
    loop: start=0, step=1, limit=4
    $region2: #{tpu_custom_call.1} parent=1 // loop_pre_header
      _
    $region3: #{tpu_custom_call.1} parent=1 // loop_header
      %s16 = sphi 0, %s20
      %p17 = scmp.ge.s32.totalorder %s16, 4
      %s23 = sphi 0, %s35
      %s24 = sphi 0, %s31
      %s25 = sphi 0, %s23
      %s26 = sphi 0, %s24
      %s27 = sphi 0, %s25
      %s28 = sphi 0, %s26
      %s42 = sphi 0, %s44
      %s45 = sphi 0, %s42
      %s46 = sphi 0, %s45
      %s62 = sphi 0, %s46
      %s66 = sphi 0, %s66
      %s68 = sphi 0, %s66
      %s69 = sphi 0, %s68
      %s83 = sphi 0, %s69
      %s87 = sphi 0, %s87
      %s89 = sphi 0, %s87
      %s90 = sphi 0, %s89
      %s104 = sphi 0, %s90
      %s108 = sphi 0, %s108
      %s110 = sphi 0, %s108
      %s111 = sphi 0, %s110
      %s125 = sphi 0, %s111
      %s129 = sphi 0, %s129
      %s131 = sphi 0, %s129
      %s132 = sphi 0, %s131
      %s146 = sphi 0, %s132
      %s150 = sphi 0, %s150
      %s152 = sphi 0, %s150
      %s153 = sphi 0, %s152
      %s167 = sphi 0, %s153
      %s175 = sphi 0, %s177
      %s178 = sphi 0, %s175
      %s179 = sphi 0, %s178
      %s195 = sphi 0, %s179
    $region4: #{tpu_custom_call.1} parent=1 // loop_header_branch
      %19 = sbr.rel (%p17) target = $region8
    $region5: #{tpu_custom_call.1} parent=1 // loop_body
      %s21 = ssub.s32 %s16, 1
      %s22 = ssub.s32 %s16, 2
      %s29 = sadd.s32 1, %s24
      %p30 = scmp.ge.s32.totalorder %s29, 1
      %s31 = scalar_select %p30, 0, %s29
      %s32 = sadd.s32 1, %s23
      %s33 = scalar_select %p30, %s32, %s23
      %p34 = scmp.ge.s32.totalorder %s33, 2
      %s35 = scalar_select %p34, 0, %s33
      %s36 = ssub.s32 1, %s23
      %s37 = smul.u32 %s24, %s36
      %s38 = ssub.s32 1, %s35
      %s39 = smul.u32 %s31, %s38
      %s40 = ssub.s32 %s37, %s39
      %p41 = scmp.eq.s32.totalorder %s40, 0
      %s43 = sadd.s32 %s42, 1
      %s44 = scalar_select %p41, %s42, %s43
      %p47 = pneg %p41
      %p48 = scmp.eq.s32.totalorder %s16, 1
      %p49 = por %p47, %p48
      %p50 = scmp.ne.s32.totalorder %s42, %s45
      %p51 = scmp.eq.s32.totalorder %s16, 0
      %p52 = por %p50, %p51
      %p53 = scmp.ne.s32.totalorder %s42, %s45
      %p54 = scmp.eq.s32.totalorder %s21, 1
      %p55 = por %p53, %p54
      %p56 = scmp.ne.s32.totalorder %s45, %s46
      %p57 = scmp.eq.s32.totalorder %s21, 0
      %p58 = por %p56, %p57
      %p59 = scmp.ne.s32.totalorder %s45, %s46
      %p60 = scmp.eq.s32.totalorder %s22, 1
      %p61 = por %p59, %p60
      %p63 = scmp.ne.s32.totalorder %s46, %s62
      %p64 = scmp.eq.s32.totalorder %s22, 0
      %p65 = por %p63, %p64
      %s67 = sadd.s32 %s66, 1
      %p70 = scmp.eq.s32.totalorder %s16, 1
      %p71 = scmp.ne.s32.totalorder %s66, %s68
      %p72 = scmp.eq.s32.totalorder %s16, 0
      %p73 = por %p71, %p72
      %p74 = scmp.ne.s32.totalorder %s66, %s68
      %p75 = scmp.eq.s32.totalorder %s21, 1
      %p76 = por %p74, %p75
      %p77 = scmp.ne.s32.totalorder %s68, %s69
      %p78 = scmp.eq.s32.totalorder %s21, 0
      %p79 = por %p77, %p78
      %p80 = scmp.ne.s32.totalorder %s68, %s69
      %p81 = scmp.eq.s32.totalorder %s22, 1
      %p82 = por %p80, %p81
      %p84 = scmp.ne.s32.totalorder %s69, %s83
      %p85 = scmp.eq.s32.totalorder %s22, 0
      %p86 = por %p84, %p85
      %s88 = sadd.s32 %s87, 1
      %p91 = scmp.eq.s32.totalorder %s16, 1
      %p92 = scmp.ne.s32.totalorder %s87, %s89
      %p93 = scmp.eq.s32.totalorder %s16, 0
      %p94 = por %p92, %p93
      %p95 = scmp.ne.s32.totalorder %s87, %s89
      %p96 = scmp.eq.s32.totalorder %s21, 1
      %p97 = por %p95, %p96
      %p98 = scmp.ne.s32.totalorder %s89, %s90
      %p99 = scmp.eq.s32.totalorder %s21, 0
      %p100 = por %p98, %p99
      %p101 = scmp.ne.s32.totalorder %s89, %s90
      %p102 = scmp.eq.s32.totalorder %s22, 1
      %p103 = por %p101, %p102
      %p105 = scmp.ne.s32.totalorder %s90, %s104
      %p106 = scmp.eq.s32.totalorder %s22, 0
      %p107 = por %p105, %p106
      %s109 = sadd.s32 %s108, 1
      %p112 = scmp.eq.s32.totalorder %s16, 1
      %p113 = scmp.ne.s32.totalorder %s108, %s110
      %p114 = scmp.eq.s32.totalorder %s16, 0
      %p115 = por %p113, %p114
      %p116 = scmp.ne.s32.totalorder %s108, %s110
      %p117 = scmp.eq.s32.totalorder %s21, 1
      %p118 = por %p116, %p117
      %p119 = scmp.ne.s32.totalorder %s110, %s111
      %p120 = scmp.eq.s32.totalorder %s21, 0
      %p121 = por %p119, %p120
      %p122 = scmp.ne.s32.totalorder %s110, %s111
      %p123 = scmp.eq.s32.totalorder %s22, 1
      %p124 = por %p122, %p123
      %p126 = scmp.ne.s32.totalorder %s111, %s125
      %p127 = scmp.eq.s32.totalorder %s22, 0
      %p128 = por %p126, %p127
      %s130 = sadd.s32 %s129, 1
      %p133 = scmp.eq.s32.totalorder %s16, 1
      %p134 = scmp.ne.s32.totalorder %s129, %s131
      %p135 = scmp.eq.s32.totalorder %s16, 0
      %p136 = por %p134, %p135
      %p137 = scmp.ne.s32.totalorder %s129, %s131
      %p138 = scmp.eq.s32.totalorder %s21, 1
      %p139 = por %p137, %p138
      %p140 = scmp.ne.s32.totalorder %s131, %s132
      %p141 = scmp.eq.s32.totalorder %s21, 0
      %p142 = por %p140, %p141
      %p143 = scmp.ne.s32.totalorder %s131, %s132
      %p144 = scmp.eq.s32.totalorder %s22, 1
      %p145 = por %p143, %p144
      %p147 = scmp.ne.s32.totalorder %s132, %s146
      %p148 = scmp.eq.s32.totalorder %s22, 0
      %p149 = por %p147, %p148
      %s151 = sadd.s32 %s150, 1
      %p154 = scmp.eq.s32.totalorder %s16, 1
      %p155 = scmp.ne.s32.totalorder %s150, %s152
      %p156 = scmp.eq.s32.totalorder %s16, 0
      %p157 = por %p155, %p156
      %p158 = scmp.ne.s32.totalorder %s150, %s152
      %p159 = scmp.eq.s32.totalorder %s21, 1
      %p160 = por %p158, %p159
      %p161 = scmp.ne.s32.totalorder %s152, %s153
      %p162 = scmp.eq.s32.totalorder %s21, 0
      %p163 = por %p161, %p162
      %p164 = scmp.ne.s32.totalorder %s152, %s153
      %p165 = scmp.eq.s32.totalorder %s22, 1
      %p166 = por %p164, %p165
      %p168 = scmp.ne.s32.totalorder %s153, %s167
      %p169 = scmp.eq.s32.totalorder %s22, 0
      %p170 = por %p168, %p169
      %s171 = smul.u32 %s23, %s24
      %s172 = smul.u32 %s35, %s31
      %s173 = ssub.s32 %s171, %s172
      %p174 = scmp.eq.s32.totalorder %s173, 0
      %s176 = sadd.s32 %s175, 1
      %s177 = scalar_select %p174, %s175, %s176
      %p180 = pneg %p174
      %p181 = scmp.eq.s32.totalorder %s16, 1
      %p182 = por %p180, %p181
      %p183 = scmp.ne.s32.totalorder %s175, %s178
      %p184 = scmp.eq.s32.totalorder %s16, 0
      %p185 = por %p183, %p184
      %p186 = scmp.ne.s32.totalorder %s175, %s178
      %p187 = scmp.eq.s32.totalorder %s21, 1
      %p188 = por %p186, %p187
      %p189 = scmp.ne.s32.totalorder %s178, %s179
      %p190 = scmp.eq.s32.totalorder %s21, 0
      %p191 = por %p189, %p190
      %p192 = scmp.ne.s32.totalorder %s178, %s179
      %p193 = scmp.eq.s32.totalorder %s22, 1
      %p194 = por %p192, %p193
      %p196 = scmp.ne.s32.totalorder %s179, %s195
      %p197 = scmp.eq.s32.totalorder %s22, 0
      %p198 = por %p196, %p197
      %p199 = scmp.le.s32.totalorder 1, %s16
      %p200 = scmp.lt.s32.totalorder %s16, 3
      %p201 = pnand %p199, %p200
      %p202 = pneg %p201
      // Predicated region
      $region9: #{tpu_custom_call.1} parent=5 // pred_check
        _
      $region10: #{tpu_custom_call.1} parent=5 // pred_check_branch
        %204 = sbr.rel (%p201) target = $region12
      $region11: #{tpu_custom_call.1} parent=5 // pred_region
        %s205 = ssub.s32 %s16, 1
        // Predicated region
        $region13: #{tpu_custom_call.1} parent=11 // pred_check
          %p206 = pneg %p79
        $region14: #{tpu_custom_call.1} parent=11 // pred_check_branch
          %208 = sbr.rel (%p206) target = $region16
        $region15: #{tpu_custom_call.1} parent=11 // pred_region
          _
        $region16: #{tpu_custom_call.1} parent=11 // pred_fallthru
          _
        // Predicated region
        $region17: #{tpu_custom_call.1} parent=11 // pred_check
          %p209 = pneg %p100
        $region18: #{tpu_custom_call.1} parent=11 // pred_check_branch
          %211 = sbr.rel (%p209) target = $region20
        $region19: #{tpu_custom_call.1} parent=11 // pred_region
          _
        $region20: #{tpu_custom_call.1} parent=11 // pred_fallthru
          _
        // Predicated region
        $region21: #{tpu_custom_call.1} parent=11 // pred_check
          %p212 = pneg %p121
        $region22: #{tpu_custom_call.1} parent=11 // pred_check_branch
          %214 = sbr.rel (%p212) target = $region24
        $region23: #{tpu_custom_call.1} parent=11 // pred_region
          _
        $region24: #{tpu_custom_call.1} parent=11 // pred_fallthru
          _
        // Predicated region
        $region25: #{tpu_custom_call.1} parent=11 // pred_check
          %p215 = pneg %p142
        $region26: #{tpu_custom_call.1} parent=11 // pred_check_branch
          %217 = sbr.rel (%p215) target = $region28
        $region27: #{tpu_custom_call.1} parent=11 // pred_region
          _
        $region28: #{tpu_custom_call.1} parent=11 // pred_fallthru
          _
        // Predicated region
        $region29: #{tpu_custom_call.1} parent=11 // pred_check
          %p218 = pneg %p163
        $region30: #{tpu_custom_call.1} parent=11 // pred_check_branch
          %220 = sbr.rel (%p218) target = $region32
        $region31: #{tpu_custom_call.1} parent=11 // pred_region
          _
        $region32: #{tpu_custom_call.1} parent=11 // pred_fallthru
          _
      $region12: #{tpu_custom_call.1} parent=5 // pred_fallthru
        _
      %p221 = scmp.lt.s32.totalorder %s16, 2
      // Predicated region
      $region33: #{tpu_custom_call.1} parent=5 // pred_check
        %p222 = pneg %p221
      $region34: #{tpu_custom_call.1} parent=5 // pred_check_branch
        %224 = sbr.rel (%p222) target = $region36
      $region35: #{tpu_custom_call.1} parent=5 // pred_region
        // Predicated region
        $region37: #{tpu_custom_call.1} parent=35 // pred_check
          %p225 = pneg %p52
        $region38: #{tpu_custom_call.1} parent=35 // pred_check_branch
          %227 = sbr.rel (%p225) target = $region40
        $region39: #{tpu_custom_call.1} parent=35 // pred_region
          %s228 = ssub.s32 1, %s23
          %s229 = smul.u32 %s24, %s228
          %s230 = smul.u32 8, %s229
          %p231 = scmp.lt.s32.totalorder %s230, 7
          %s232 = scalar_select %p231, %s230, 7
          %s233 = smul.addr %s232, 4
          %s234 = scalar_lea.vmem %s0, %s233
          %s235 = ssub.s32 1, %s23
          %s236 = smul.u32 %s24, %s235
          %s237 = smul.u32 8, %s236
        $region40: #{tpu_custom_call.1} parent=35 // pred_fallthru
          _
      $region36: #{tpu_custom_call.1} parent=5 // pred_fallthru
        _
      %p238 = scmp.le.s32.totalorder 1, %s16
      %p239 = scmp.lt.s32.totalorder %s16, 3
      %p240 = pnand %p238, %p239
      %p241 = pneg %p240
      // Predicated region
      $region41: #{tpu_custom_call.1} parent=5 // pred_check
        _
      $region42: #{tpu_custom_call.1} parent=5 // pred_check_branch
        %243 = sbr.rel (%p240) target = $region44
      $region43: #{tpu_custom_call.1} parent=5 // pred_region
        %s244 = ssub.s32 %s16, 1
        %s245 = ssub.s32 1, %s25
        %s246 = smul.u32 %s26, %s245
        %s247 = smul.u32 8, %s246
        %p248 = scmp.lt.s32.totalorder %s247, 7
        %s249 = scalar_select %p248, %s247, 7
        %s250 = smul.addr %s249, 4
        %s251 = scalar_lea.vmem %s0, %s250
        %p252 = pneg %p58
        %p253 = pneg %p55
        %p254 = pneg %p79
        %p255 = pneg %p76
        %p256 = pneg %p100
        %p257 = pneg %p97
        %p258 = pneg %p121
        %p259 = pneg %p118
        %p260 = pneg %p142
        %p261 = pneg %p139
        %p262 = pneg %p163
        %p263 = pneg %p160
        %p264 = pneg %p191
        %p265 = pneg %p188
        %s266 = sand.u32 %s178, 1
        %s267 = scalar_lea.sflag [#allocation9], %s266
        %s268 = sand.u32 %s178, 1
        %s269 = scalar_lea.vmem [#allocation8], %s268
        %s270 = ssub.s32 1, %s25
        %s271 = smul.u32 %s26, %s270
        %s272 = smul.u32 8, %s271
        %p273 = scmp.lt.s32.totalorder %s272, 7
        %s274 = scalar_select %p273, %s272, 7
        %s275 = smul.addr %s274, 4
        %s276 = scalar_lea.vmem %s0, %s275
        %s277 = ssub.s32 1, %s25
        %s278 = smul.u32 %s26, %s277
        %s279 = smul.u32 8, %s278
        %s280 = smul.u32 %s25, %s26
        %p282 = scmp.eq.s32.totalorder %s25, 0
        // Predicated region
        $region45: #{tpu_custom_call.1} parent=43 // pred_check
          %p283 = pneg %p282
        $region46: #{tpu_custom_call.1} parent=43 // pred_check_branch
          %285 = sbr.rel (%p283) target = $region48
        $region47: #{tpu_custom_call.1} parent=43 // pred_region
          %p286 = scmp.eq.s32.totalorder %s26, 0
          // Predicated region
          $region49: #{tpu_custom_call.1} parent=47 // pred_check
            %p287 = pneg %p286
          $region50: #{tpu_custom_call.1} parent=47 // pred_check_branch
            %289 = sbr.rel (%p287) target = $region52
          $region51: #{tpu_custom_call.1} parent=47 // pred_region
            %v290 = vlaneseq
            %vm291 = vcmp.ge.s32.totalorder %v290, 0
            %vm292 = vcmp.lt.s32.totalorder %v290, 256
            %vm293 = vmand %vm291, %vm292
            %294 = vst.msk [vmem:[#allocation2] sm:$0x3] %vm293, 0.0
            %295 = vst.msk [vmem:[#allocation3] sm:$0x3] %vm293, 0.0
          $region52: #{tpu_custom_call.1} parent=47 // pred_fallthru
            _
          %v296 = vld [vmem:[%s276] sm:$0xf]
          %v297 = vld [vmem:[%s276 + $0x4] sm:$0xf]
          %v298 = vld [vmem:[%s276 + $0x8] sm:$0xf]
          %v299 = vld [vmem:[%s276 + $0xc] sm:$0xf]
          %v300 = vld [vmem:[%s276 + $0x10] sm:$0xf]
          %v301 = vld [vmem:[%s276 + $0x14] sm:$0xf]
          %v302 = vld [vmem:[%s276 + $0x18] sm:$0xf]
          %v303 = vld [vmem:[%s276 + $0x1c] sm:$0xf]
          %v304 = vld [vmem:[%s1] sm:$0xff]
          %v305 = vld [vmem:[%s1 + $0x8] sm:$0xff]
          %v306 = vld [vmem:[%s1 + $0x10] sm:$0xff]
          %v307 = vld [vmem:[%s1 + $0x18] sm:$0xff]
          %v316 = vunpack.c.l.b16 %v296
          %v317 = vunpack.c.l.b16 %v297
          %v318 = vunpack.c.l.b16 %v298
          %v319 = vunpack.c.l.b16 %v299
          %v320 = vunpack.c.l.b16 %v300
          %v321 = vunpack.c.l.b16 %v301
          %v322 = vunpack.c.l.b16 %v302
          %v323 = vunpack.c.l.b16 %v303
          %v324 = vpack.c.b16 %v317, %v316
          %v325 = vpack.c.b16 %v319, %v318
          %v326 = vpack.c.b16 %v321, %v320
          %v327 = vpack.c.b16 %v323, %v322
          %v332 = vunpack.c.l.b16 %v304
          %v333 = vunpack.c.h.b16 %v304
          %v334 = vunpack.c.l.b16 %v305
          %v335 = vunpack.c.h.b16 %v305
          %v336 = vunpack.c.l.b16 %v306
          %v337 = vunpack.c.h.b16 %v306
          %v338 = vunpack.c.l.b16 %v307
          %v339 = vunpack.c.h.b16 %v307
          %v340 = vpack.c.b16 %v334, %v332
          %v341 = vpack.c.b16 %v335, %v333
          %v342 = vpack.c.b16 %v338, %v336
          %v343 = vpack.c.b16 %v339, %v337
          %vm348 = vcmask 261120
          %v350 = vsel %vm348, %v324, 0
          %v353 = vsel %vm348, %v325, 0
          %v356 = vsel %vm348, %v326, 0
          %v359 = vsel %vm348, %v327, 0
          %361 = vmatpush.bf16.msra.mxu0 0
          %362 = vmatpush.bf16.msra.mxu0 0
          %363 = vmatpush.bf16.msra.mxu0 0
          %364 = vmatpush.bf16.msra.mxu0 0
          %365 = vmatpush.bf16.msra.mxu0 0
          %366 = vmatpush.bf16.msra.mxu0 0
          %367 = vmatpush.bf16.msra.mxu0 %v342
          %368 = vmatpush.bf16.msra.mxu0 %v340
          %369 = vmatmul.bf16.gmra.mxu0 %v350
          %v370 = vpop.f32.mrf.mxu0
          %v371 = vadd.f32 0.0, %v370
          %v372 = vpop.f32.mrf.mxu0
          %v373 = vadd.f32 0.0, %v372
          %374 = vmatmul.bf16.gmra.mxu0 %v353
          %v375 = vpop.f32.mrf.mxu0
          %v376 = vadd.f32 0.0, %v375
          %v377 = vpop.f32.mrf.mxu0
          %v378 = vadd.f32 0.0, %v377
          %379 = vmatmul.bf16.gmra.mxu0 %v356
          %v380 = vpop.f32.mrf.mxu0
          %v381 = vadd.f32 0.0, %v380
          %v382 = vpop.f32.mrf.mxu0
          %v383 = vadd.f32 0.0, %v382
          %384 = vmatmul.bf16.gmra.mxu0 %v359
          %v385 = vpop.f32.mrf.mxu0
          %v386 = vadd.f32 0.0, %v385
          %v387 = vpop.f32.mrf.mxu0
          %v388 = vadd.f32 0.0, %v387
          %389 = vdwg.mxu0
          %390 = vmatpush.bf16.msra.mxu0 0
          %391 = vmatpush.bf16.msra.mxu0 0
          %392 = vmatpush.bf16.msra.mxu0 0
          %393 = vmatpush.bf16.msra.mxu0 0
          %394 = vmatpush.bf16.msra.mxu0 0
          %395 = vmatpush.bf16.msra.mxu0 0
          %396 = vmatpush.bf16.msra.mxu0 %v343
          %397 = vmatpush.bf16.msra.mxu0 %v341
          %398 = vmatmul.bf16.gmra.mxu0 %v350
          %v399 = vpop.f32.mrf.mxu0
          %v400 = vadd.f32 0.0, %v399
          %v401 = vpop.f32.mrf.mxu0
          %v402 = vadd.f32 0.0, %v401
          %403 = vmatmul.bf16.gmra.mxu0 %v353
          %v404 = vpop.f32.mrf.mxu0
          %v405 = vadd.f32 0.0, %v404
          %v406 = vpop.f32.mrf.mxu0
          %v407 = vadd.f32 0.0, %v406
          %408 = vmatmul.bf16.gmra.mxu0 %v356
          %v409 = vpop.f32.mrf.mxu0
          %v410 = vadd.f32 0.0, %v409
          %v411 = vpop.f32.mrf.mxu0
          %v412 = vadd.f32 0.0, %v411
          %413 = vmatmul.bf16.gmra.mxu0 %v359
          %v414 = vpop.f32.mrf.mxu0
          %v415 = vadd.f32 0.0, %v414
          %v416 = vpop.f32.mrf.mxu0
          %v417 = vadd.f32 0.0, %v416
          %418 = vdwg.mxu0
          %v419 = vld [vmem:[#allocation2] sm:$0x3]
          %v420 = vadd.f32 %v371, %v373
          %v421 = vadd.f32 %v420, %v376
          %v422 = vadd.f32 %v421, %v378
          %v423 = vadd.f32 %v422, %v381
          %v424 = vadd.f32 %v423, %v383
          %v425 = vadd.f32 %v424, %v386
          %v426 = vadd.f32 %v425, %v388
          %v427 = vrot.slane %v426, 4
          %v428 = vadd.f32 %v426, %v427
          %v429 = vrot.slane %v428, 2
          %v430 = vadd.f32 %v428, %v429
          %v431 = vrot.slane %v430, 1
          %v432 = vadd.f32 %v430, %v431
          %v433 = vadd.f32 %v400, %v402
          %v434 = vadd.f32 %v433, %v405
          %v435 = vadd.f32 %v434, %v407
          %v436 = vadd.f32 %v435, %v410
          %v437 = vadd.f32 %v436, %v412
          %v438 = vadd.f32 %v437, %v415
          %v439 = vadd.f32 %v438, %v417
          %v440 = vrot.slane %v439, 4
          %v441 = vadd.f32 %v439, %v440
          %v442 = vrot.slane %v441, 2
          %v443 = vadd.f32 %v441, %v442
          %v444 = vrot.slane %v443, 1
          %v445 = vadd.f32 %v443, %v444
          %v448 = vrot.slane %v445, 7
          %vm449 = vcmask 1040384
          %v450 = vsel %vm449, %v432, %v448
          %v452 = vadd.f32 %v419, %v450
          %v453 = vlaneseq
          %vm454 = vcmp.ge.s32.totalorder %v453, 0
          %vm455 = vcmp.lt.s32.totalorder %v453, 256
          %vm456 = vmand %vm454, %vm455
          %457 = vst.msk [vmem:[#allocation2] sm:$0x3] %vm456, %v452
          %v458 = vld [vmem:[#allocation3] sm:$0x3]
          %v459 = vmul.f32 %v371, %v371
          %v460 = vmul.f32 %v400, %v400
          %v461 = vmul.f32 %v373, %v373
          %v462 = vmul.f32 %v402, %v402
          %v463 = vmul.f32 %v376, %v376
          %v464 = vmul.f32 %v405, %v405
          %v465 = vmul.f32 %v378, %v378
          %v466 = vmul.f32 %v407, %v407
          %v467 = vmul.f32 %v381, %v381
          %v468 = vmul.f32 %v410, %v410
          %v469 = vmul.f32 %v383, %v383
          %v470 = vmul.f32 %v412, %v412
          %v471 = vmul.f32 %v386, %v386
          %v472 = vmul.f32 %v415, %v415
          %v473 = vmul.f32 %v388, %v388
          %v474 = vmul.f32 %v417, %v417
          %v475 = vadd.f32 %v459, %v461
          %v476 = vadd.f32 %v475, %v463
          %v477 = vadd.f32 %v476, %v465
          %v478 = vadd.f32 %v477, %v467
          %v479 = vadd.f32 %v478, %v469
          %v480 = vadd.f32 %v479, %v471
          %v481 = vadd.f32 %v480, %v473
          %v482 = vrot.slane %v481, 4
          %v483 = vadd.f32 %v481, %v482
          %v484 = vrot.slane %v483, 2
          %v485 = vadd.f32 %v483, %v484
          %v486 = vrot.slane %v485, 1
          %v487 = vadd.f32 %v485, %v486
          %v488 = vadd.f32 %v460, %v462
          %v489 = vadd.f32 %v488, %v464
          %v490 = vadd.f32 %v489, %v466
          %v491 = vadd.f32 %v490, %v468
          %v492 = vadd.f32 %v491, %v470
          %v493 = vadd.f32 %v492, %v472
          %v494 = vadd.f32 %v493, %v474
          %v495 = vrot.slane %v494, 4
          %v496 = vadd.f32 %v494, %v495
          %v497 = vrot.slane %v496, 2
          %v498 = vadd.f32 %v496, %v497
          %v499 = vrot.slane %v498, 1
          %v500 = vadd.f32 %v498, %v499
          %v503 = vrot.slane %v500, 7
          %v504 = vsel %vm449, %v487, %v503
          %v506 = vadd.f32 %v458, %v504
          %507 = vst.msk [vmem:[#allocation3] sm:$0x3] %vm456, %v506
          %s508 = smul.u32 %s26, 64
          %s509 = sshra.s32 %s508, 3
          %s510 = sand.u32 %s508, 7
          %s511 = smul.u32 %s509, 2
          %s512 = smul.addr %s511, 8
          %s513 = scalar_lea.vmem [#allocation6], %s512
          %514 = vst [vmem:[%s513] sm:$0xff] %v371
          %515 = vst [vmem:[%s513 + $0x8] sm:$0xff] %v400
          %516 = vst [vmem:[%s513 + $0x10] sm:$0xff] %v373
          %517 = vst [vmem:[%s513 + $0x18] sm:$0xff] %v402
          %518 = vst [vmem:[%s513 + $0x20] sm:$0xff] %v376
          %519 = vst [vmem:[%s513 + $0x28] sm:$0xff] %v405
          %520 = vst [vmem:[%s513 + $0x30] sm:$0xff] %v378
          %521 = vst [vmem:[%s513 + $0x38] sm:$0xff] %v407
          %522 = vst [vmem:[%s513 + $0x40] sm:$0xff] %v381
          %523 = vst [vmem:[%s513 + $0x48] sm:$0xff] %v410
          %524 = vst [vmem:[%s513 + $0x50] sm:$0xff] %v383
          %525 = vst [vmem:[%s513 + $0x58] sm:$0xff] %v412
          %526 = vst [vmem:[%s513 + $0x60] sm:$0xff] %v386
          %527 = vst [vmem:[%s513 + $0x68] sm:$0xff] %v415
          %528 = vst [vmem:[%s513 + $0x70] sm:$0xff] %v388
          %529 = vst [vmem:[%s513 + $0x78] sm:$0xff] %v417
        $region48: #{tpu_custom_call.1} parent=43 // pred_fallthru
          _
        %p530 = scmp.eq.s32.totalorder %s25, 1
        // Predicated region
        $region53: #{tpu_custom_call.1} parent=43 // pred_check
          %p531 = pneg %p530
        $region54: #{tpu_custom_call.1} parent=43 // pred_check_branch
          %533 = sbr.rel (%p531) target = $region56
        $region55: #{tpu_custom_call.1} parent=43 // pred_region
          %p534 = scmp.eq.s32.totalorder %s26, 0
          // Predicated region
          $region57: #{tpu_custom_call.1} parent=55 // pred_check
            %p535 = pneg %p534
          $region58: #{tpu_custom_call.1} parent=55 // pred_check_branch
            %537 = sbr.rel (%p535) target = $region60
          $region59: #{tpu_custom_call.1} parent=55 // pred_region
            %v538 = vld [vmem:[#allocation2] sm:$0x3]
            %v539 = vmul.f32 %v538, 0.015625
            %v540 = vld [vmem:[#allocation3] sm:$0x3]
            %v541 = vmul.f32 %v540, 0.015625
            %v542 = vmul.f32 %v539, %v539
            %v543 = vsub.f32 %v541, %v542
            %v544 = vmax.f32 %v543, 0.0
            %v545 = vadd.f32 %v544, 1e-05
            %v546 = vrsqrt.pop %v545
            %v547 = vmul.f32 %v546, %v545
            %v548 = vmul.f32 %v547, %v546
            %v549 = vmul.f32 0.5, %v548
            %v550 = vsub.f32 1.5, %v549
            %v551 = vmul.f32 %v546, %v550
            %vm552 = vweird.f32 %v545
            %vm553 = vweird.f32 %v546
            %vm554 = vmor %vm552, %vm553
            %v555 = vsel %vm554, %v546, %v551
            %v556 = vld [vmem:[%s2] sm:$0x3]
            %v557 = vmul.f32 %v556, %v555
            %v558 = vlaneseq
            %vm559 = vcmp.ge.s32.totalorder %v558, 0
            %vm560 = vcmp.lt.s32.totalorder %v558, 256
            %vm561 = vmand %vm559, %vm560
            %562 = vst.msk [vmem:[#allocation4] sm:$0x3] %vm561, %v557
            %v563 = vld [vmem:[%s3] sm:$0x3]
            %v564 = vmul.f32 %v539, %v557
            %v565 = vsub.f32 %v563, %v564
            %566 = vst.msk [vmem:[#allocation5] sm:$0x3] %vm561, %v565
          $region60: #{tpu_custom_call.1} parent=55 // pred_fallthru
            _
          %s567 = smul.u32 %s26, 64
          %s568 = sshra.s32 %s567, 3
          %s569 = sand.u32 %s567, 7
          %s570 = smul.u32 %s568, 2
          %s571 = smul.addr %s570, 8
          %s572 = scalar_lea.vmem [#allocation6], %s571
          %v573 = vld [vmem:[%s572] sm:$0xff]
          %v574 = vld [vmem:[%s572 + $0x8] sm:$0xff]
          %v575 = vld [vmem:[%s572 + $0x10] sm:$0xff]
          %v576 = vld [vmem:[%s572 + $0x18] sm:$0xff]
          %v577 = vld [vmem:[%s572 + $0x20] sm:$0xff]
          %v578 = vld [vmem:[%s572 + $0x28] sm:$0xff]
          %v579 = vld [vmem:[%s572 + $0x30] sm:$0xff]
          %v580 = vld [vmem:[%s572 + $0x38] sm:$0xff]
          %v581 = vld [vmem:[%s572 + $0x40] sm:$0xff]
          %v582 = vld [vmem:[%s572 + $0x48] sm:$0xff]
          %v583 = vld [vmem:[%s572 + $0x50] sm:$0xff]
          %v584 = vld [vmem:[%s572 + $0x58] sm:$0xff]
          %v585 = vld [vmem:[%s572 + $0x60] sm:$0xff]
          %v586 = vld [vmem:[%s572 + $0x68] sm:$0xff]
          %v587 = vld [vmem:[%s572 + $0x70] sm:$0xff]
          %v588 = vld [vmem:[%s572 + $0x78] sm:$0xff]
          %v589 = vld [vmem:[#allocation4] sm:$0x3]
          %v591 = vperm.slane %v589, 0
          %v592 = vperm.slane %v589, 1
          %v595 = vmul.f32 %v573, %v591
          %v596 = vmul.f32 %v574, %v592
          %v597 = vmul.f32 %v575, %v591
          %v598 = vmul.f32 %v576, %v592
          %v599 = vmul.f32 %v577, %v591
          %v600 = vmul.f32 %v578, %v592
          %v601 = vmul.f32 %v579, %v591
          %v602 = vmul.f32 %v580, %v592
          %v603 = vmul.f32 %v581, %v591
          %v604 = vmul.f32 %v582, %v592
          %v605 = vmul.f32 %v583, %v591
          %v606 = vmul.f32 %v584, %v592
          %v607 = vmul.f32 %v585, %v591
          %v608 = vmul.f32 %v586, %v592
          %v609 = vmul.f32 %v587, %v591
          %v610 = vmul.f32 %v588, %v592
          %v611 = vld [vmem:[#allocation5] sm:$0x3]
          %v613 = vperm.slane %v611, 0
          %v614 = vperm.slane %v611, 1
          %v617 = vadd.f32 %v595, %v613
          %v618 = vadd.f32 %v596, %v614
          %v619 = vadd.f32 %v597, %v613
          %v620 = vadd.f32 %v598, %v614
          %v621 = vadd.f32 %v599, %v613
          %v622 = vadd.f32 %v600, %v614
          %v623 = vadd.f32 %v601, %v613
          %v624 = vadd.f32 %v602, %v614
          %v625 = vadd.f32 %v603, %v613
          %v626 = vadd.f32 %v604, %v614
          %v627 = vadd.f32 %v605, %v613
          %v628 = vadd.f32 %v606, %v614
          %v629 = vadd.f32 %v607, %v613
          %v630 = vadd.f32 %v608, %v614
          %v631 = vadd.f32 %v609, %v613
          %v632 = vadd.f32 %v610, %v614
          %v633 = vmul.f32 %v617, 0.2
          %v634 = vmul.f32 %v618, 0.2
          %v635 = vmul.f32 %v619, 0.2
          %v636 = vmul.f32 %v620, 0.2
          %v637 = vmul.f32 %v621, 0.2
          %v638 = vmul.f32 %v622, 0.2
          %v639 = vmul.f32 %v623, 0.2
          %v640 = vmul.f32 %v624, 0.2
          %v641 = vmul.f32 %v625, 0.2
          %v642 = vmul.f32 %v626, 0.2
          %v643 = vmul.f32 %v627, 0.2
          %v644 = vmul.f32 %v628, 0.2
          %v645 = vmul.f32 %v629, 0.2
          %v646 = vmul.f32 %v630, 0.2
          %v647 = vmul.f32 %v631, 0.2
          %v648 = vmul.f32 %v632, 0.2
          %v649 = vmax.f32 %v617, %v633
          %v650 = vmax.f32 %v618, %v634
          %v651 = vmax.f32 %v619, %v635
          %v652 = vmax.f32 %v620, %v636
          %v653 = vmax.f32 %v621, %v637
          %v654 = vmax.f32 %v622, %v638
          %v655 = vmax.f32 %v623, %v639
          %v656 = vmax.f32 %v624, %v640
          %v657 = vmax.f32 %v625, %v641
          %v658 = vmax.f32 %v626, %v642
          %v659 = vmax.f32 %v627, %v643
          %v660 = vmax.f32 %v628, %v644
          %v661 = vmax.f32 %v629, %v645
          %v662 = vmax.f32 %v630, %v646
          %v663 = vmax.f32 %v631, %v647
          %v664 = vmax.f32 %v632, %v648
          %v665 = vld [vmem:[%s4] sm:$0x3]
          %s666 = sld [smem:[#allocation7]]
          %v667 = vstv %s666
          %v669 = vperm.slane %v665, 0
          %v670 = vperm.slane %v665, 1
          %673 = vmatpush.xpose.msra.mxu0 0.0
          %674 = vmatpush.xpose.msra.mxu0 0.0
          %675 = vmatpush.xpose.msra.mxu0 0.0
          %676 = vmatpush.xpose.msra.mxu0 0.0
          %677 = vmatpush.xpose.msra.mxu0 0.0
          %678 = vmatpush.xpose.msra.mxu0 0.0
          %679 = vmatpush.xpose.msra.mxu0 0.0
          %680 = vmatpush.xpose.msra.mxu0 0.0
          %681 = vmatpush.xpose.msra.mxu0 %v663
          %682 = vmatpush.xpose.msra.mxu0 %v661
          %683 = vmatpush.xpose.msra.mxu0 %v659
          %684 = vmatpush.xpose.msra.mxu0 %v657
          %685 = vmatpush.xpose.msra.mxu0 %v655
          %686 = vmatpush.xpose.msra.mxu0 %v653
          %687 = vmatpush.xpose.msra.mxu0 %v651
          %688 = vmatpush.xpose.msra.mxu0 %v649
          %689 = vmatmul.f32.gmra.mxu0 %v669
          %v690 = vpop.f32.mrf.mxu0
          %v691 = vadd.f32 %v667, %v690
          %692 = vdwg.mxu0
          %693 = vmatpush.xpose.msra.mxu0 0.0
          %694 = vmatpush.xpose.msra.mxu0 0.0
          %695 = vmatpush.xpose.msra.mxu0 0.0
          %696 = vmatpush.xpose.msra.mxu0 0.0
          %697 = vmatpush.xpose.msra.mxu0 0.0
          %698 = vmatpush.xpose.msra.mxu0 0.0
          %699 = vmatpush.xpose.msra.mxu0 0.0
          %700 = vmatpush.xpose.msra.mxu0 0.0
          %701 = vmatpush.xpose.msra.mxu0 %v664
          %702 = vmatpush.xpose.msra.mxu0 %v662
          %703 = vmatpush.xpose.msra.mxu0 %v660
          %704 = vmatpush.xpose.msra.mxu0 %v658
          %705 = vmatpush.xpose.msra.mxu0 %v656
          %706 = vmatpush.xpose.msra.mxu0 %v654
          %707 = vmatpush.xpose.msra.mxu0 %v652
          %708 = vmatpush.xpose.msra.mxu0 %v650
          %709 = vmatmul.f32.gmra.mxu0 %v670
          %v710 = vpop.f32.mrf.mxu0
          %v711 = vadd.f32 %v691, %v710
          %712 = vdwg.mxu0
          %vm713 = vcmask 516096
          %714 = vst.msk [vmem:[%s269] sm:$0x1] %vm713, %v711
        $region56: #{tpu_custom_call.1} parent=43 // pred_fallthru
          _
        %s715 = sand.u32 %s178, 1
        %s716 = scalar_lea.sflag [#allocation9], %s715
        %s717 = sand.u32 %s178, 1
        %s718 = scalar_lea.vmem [#allocation8], %s717
        // Predicated region
        $region61: #{tpu_custom_call.1} parent=43 // pred_check
          %p719 = pneg %p188
        $region62: #{tpu_custom_call.1} parent=43 // pred_check_branch
          %721 = sbr.rel (%p719) target = $region64
        $region63: #{tpu_custom_call.1} parent=43 // pred_region
          %s722 = smul.u32 %s25, %s26
          %724 = vsyncadd %s716, 0
          %s725 = scalar_lea.hbm %s6, %s722
          %s727 = sshll.u32 %s718, 4
          %s728 = int_to_ptr.vmem [resolvable:$true] %s727
          %s729 = sshll.u32 %s725, 4
          %s730 = int_to_ptr.hbm [resolvable:$true] %s729
          %732 = dma.vmem_to_hbm [thread:$0]  %s728, 16, %s730, %s716
        $region64: #{tpu_custom_call.1} parent=43 // pred_fallthru
          _
      $region44: #{tpu_custom_call.1} parent=5 // pred_fallthru
        _
      %p733 = scmp.le.s32.totalorder 2, %s16
      // Predicated region
      $region65: #{tpu_custom_call.1} parent=5 // pred_check
        %p734 = pneg %p733
      $region66: #{tpu_custom_call.1} parent=5 // pred_check_branch
        %736 = sbr.rel (%p734) target = $region68
      $region67: #{tpu_custom_call.1} parent=5 // pred_region
        %s737 = ssub.s32 %s16, 2
        // Predicated region
        $region69: #{tpu_custom_call.1} parent=67 // pred_check
          %p738 = pneg %p194
        $region70: #{tpu_custom_call.1} parent=67 // pred_check_branch
          %740 = sbr.rel (%p738) target = $region72
        $region71: #{tpu_custom_call.1} parent=67 // pred_region
          %s741 = sand.u32 %s179, 1
          %s742 = scalar_lea.sflag [#allocation9], %s741
          %s743 = sand.u32 %s179, 1
          %s744 = scalar_lea.vmem [#allocation8], %s743
          %746 = dma.done %s742, 16
        $region72: #{tpu_custom_call.1} parent=67 // pred_fallthru
          _
      $region68: #{tpu_custom_call.1} parent=5 // pred_fallthru
        _
    $region6: #{tpu_custom_call.1} parent=1 // loop_footer
      %s20 = sadd.s32 1, %s16
    $region7: #{tpu_custom_call.1} parent=1 // loop_footer_branch
      %15 = sbr.rel target = $region3
    $region8: #{tpu_custom_call.1} parent=1 // loop_exit
      _
    %747 = vsyncpa [#allocation9], 1
    %s748 = scalar_lea.sflag [#allocation9], 1
    %749 = vsyncpa %s748, 1

</llo_original>
